<compile_context>
chip_gen: v7x
topology: tpu7x:2x2x1
jax: 0.10.0
libtpu: 0.0.40
codegen_flags: <defaults>
</compile_context>

<pallas_src>
import functools

import numpy as np
import jax
import jax.numpy as jnp
from jax.experimental import pallas as pl
from jax.experimental.pallas import tpu as pltpu


_HIGH = jax.lax.Precision.HIGHEST
_BATCH_BLOCK = 8        # sublane width
_MAX_UNROLL = 32        # max timesteps unrolled per grid step


# ----------------------------------------------------------------------------
# State-space matrices (zoh discretization of the Legendre LTI system),
# computed in float64 numpy (matches scipy.signal.cont2discrete 'zoh').
# ----------------------------------------------------------------------------
def _expm(M):
    """Matrix exponential via scaling-and-squaring + Taylor series."""
    n = M.shape[0]
    norm = np.linalg.norm(M, ord=np.inf)
    s = 0 if norm == 0 else max(0, int(np.ceil(np.log2(norm))) + 1)
    A = M / (2.0 ** s)
    E = np.eye(n, dtype=np.float64)
    term = np.eye(n, dtype=np.float64)
    for k in range(1, 30):
        term = term @ A / k
        E = E + term
    for _ in range(s):
        E = E @ E
    return E


def state_space_matrices(memory_size, theta):
    Q = np.arange(memory_size, dtype=np.float64).reshape(-1, 1)
    R = (2 * Q + 1) / theta
    i, j = np.meshgrid(Q, Q, indexing="ij")
    A = R * np.where(i < j, -1.0, (-1.0) ** (i - j + 1))
    B = R * (-1.0) ** Q  # [M, 1]
    M = memory_size
    em = np.zeros((M + 1, M + 1), dtype=np.float64)
    em[:M, :M] = A
    em[:M, M:] = B
    ms = _expm(em * 1.0)
    Ad = ms[:M, :M]
    Bd = ms[:M, M:M + 1]
    return Ad.astype(np.float32), Bd.astype(np.float32)


# ----------------------------------------------------------------------------
# Deterministic parameter initialization (mirrors LMUCell.initParameters with
# psmnist=False: LeCun-uniform e_x / e_h, zero e_m, Xavier-normal W_*).
# ----------------------------------------------------------------------------
def init_params(key, input_size, hidden_size, memory_size, theta):
    k_ex, k_eh, k_wx, k_wh, k_wm = jax.random.split(key, 5)

    def lecun_uniform(k, shape, fan_in):
        limit = np.sqrt(3.0 / fan_in)
        return jax.random.uniform(k, shape, jnp.float32, -limit, limit)

    def xavier_normal(k, shape):  # shape = (fan_out, fan_in)
        std = np.sqrt(2.0 / (shape[0] + shape[1]))
        return jax.random.normal(k, shape, jnp.float32) * std

    A, B = state_space_matrices(memory_size, theta)
    return {
        "e_x": lecun_uniform(k_ex, (1, input_size), input_size),
        "e_h": lecun_uniform(k_eh, (1, hidden_size), hidden_size),
        "e_m": jnp.zeros((1, memory_size), jnp.float32),
        "W_x": xavier_normal(k_wx, (hidden_size, input_size)),
        "W_h": xavier_normal(k_wh, (hidden_size, hidden_size)),
        "W_m": xavier_normal(k_wm, (hidden_size, memory_size)),
        "A": jnp.asarray(A),      # [M, M]
        "B": jnp.asarray(B),      # [M, 1]
    }


# ----------------------------------------------------------------------------
# Pallas kernel: one grid step == t_chunk timesteps, fully unrolled.
# Per timestep:  pre = x_all_t + s @ W_all ;  s' = where(col < H, tanh(pre), pre)
# where s = [h | m] is carried in VMEM scratch across grid steps.
# ----------------------------------------------------------------------------
def lmu_kernel(xall_ref, w_ref, o_ref, sfin_ref, s_scr, *, t_chunk, hidden):
    c = pl.program_id(1)                      # time-chunk axis (arbitrary)

    @pl.when(c == 0)
    def _():                                  # new batch block -> zero state
        s_scr[...] = jnp.zeros_like(s_scr)

    w = w_ref[...]                            # [H+M, H+M] packed recurrent weights
    s = s_scr[...]                            # [Bblk, H+M] carried state [h | m]

    col = jax.lax.broadcasted_iota(jnp.int32, s.shape, 1)
    is_h = col < hidden                       # lanes < H -> tanh (h part)

    for t in range(t_chunk):                  # bounded unroll (<= _MAX_UNROLL)
        pre = xall_ref[t] + jnp.dot(s, w, preferred_element_type=jnp.float32)
        s = jnp.where(is_h, jnp.tanh(pre), pre)
        # h_t = s[:, :H] written at static column offset; store is off the
        # serial dependence chain.
        o_ref[:, t * hidden:(t + 1) * hidden] = s[:, :hidden]

    s_scr[...] = s

    @pl.when(c == pl.num_programs(1) - 1)
    def _():
        sfin_ref[...] = s                     # packed final [h | m]


# ----------------------------------------------------------------------------
# Wrapper: exact algebraic folding of the LMU cell into packed matrices.
#
#   u   = x e_x^T + h e_h^T + m e_m^T
#   m'  = m A^T + u B^T            = x Xm + h Hm + m Am
#   h'  = tanh(x W_x^T + h W_h^T + m' W_m^T)
#       = tanh(x Xh + h Hh + m Mh)
# with  bWm = B^T W_m^T,  Am = A^T + e_m^T B^T,
#       Hh = W_h^T + e_h^T bWm,  Hm = e_h^T B^T,  Mh = Am W_m^T,
#       Xh = W_x^T + e_x^T bWm,  Xm = e_x^T B^T.
# ----------------------------------------------------------------------------
def _pack_weights(params):
    AT = params["A"].T                    # [M, M]
    BT = params["B"].T                    # [1, M]
    WmT = params["W_m"].T                 # [M, H]
    exT = params["e_x"].T                 # [I, 1]
    ehT = params["e_h"].T                 # [H, 1]
    emT = params["e_m"].T                 # [M, 1]

    bWm = jnp.dot(BT, WmT, precision=_HIGH)                    # [1, H]
    Hh = params["W_h"].T + jnp.dot(ehT, bWm, precision=_HIGH)  # [H, H]
    Hm = jnp.dot(ehT, BT, precision=_HIGH)                     # [H, M]
    Am = AT + jnp.dot(emT, BT, precision=_HIGH)                # [M, M]
    Mh = jnp.dot(Am, WmT, precision=_HIGH)                     # [M, H]
    W_all = jnp.concatenate(
        [jnp.concatenate([Hh, Hm], axis=1),
         jnp.concatenate([Mh, Am], axis=1)], axis=0)           # [H+M, H+M]

    Xh = params["W_x"].T + jnp.dot(exT, bWm, precision=_HIGH)  # [I, H]
    Xm = jnp.dot(exT, BT, precision=_HIGH)                     # [I, M]
    X_all = jnp.concatenate([Xh, Xm], axis=1)                  # [I, H+M]
    return W_all, X_all


def _pick_t_chunk(seq_len):
    if seq_len <= _MAX_UNROLL:
        return seq_len
    best = 1
    for d in range(1, _MAX_UNROLL + 1):
        if seq_len % d == 0:
            best = d
    return best


def lmu_forward(x_bsi, params, t_chunk=None):
    """x_bsi: [batch, seq, input] -> (output [batch, seq, hidden], (h, m))."""
    B, S, I = x_bsi.shape
    H = params["W_x"].shape[0]
    M = params["A"].shape[0]
    HM = H + M

    if t_chunk is None:
        t_chunk = _pick_t_chunk(S)
    assert S % t_chunk == 0
    n_chunks = S // t_chunk

    # Pad batch up to the sublane width; padded rows are zero and provably
    # stay zero through the recurrence.
    Bblk = _BATCH_BLOCK
    Bp = ((B + Bblk - 1) // Bblk) * Bblk
    n_b = Bp // Bblk
    if Bp != B:
        x_pad = jnp.concatenate(
            [x_bsi, jnp.zeros((Bp - B, S, I), x_bsi.dtype)], axis=0)
    else:
        x_pad = x_bsi

    W_all, X_all = _pack_weights(params)
    # Hoisted, non-recurrent input projection: one batched GEMM over all
    # timesteps -> [S, Bp, H+M] chunks fed to the serial kernel.
    xall = jnp.einsum("bsi,ij->sbj", x_pad, X_all, precision=_HIGH)

    kernel = functools.partial(lmu_kernel, t_chunk=t_chunk, hidden=H)

    out_slab, s_fin = pl.pallas_call(
        kernel,
        out_shape=(
            jax.ShapeDtypeStruct((Bp, S * H), jnp.float32),   # lane-dense output
            jax.ShapeDtypeStruct((Bp, HM), jnp.float32),      # packed final state
        ),
        grid_spec=pltpu.PrefetchScalarGridSpec(
            num_scalar_prefetch=0,
            grid=(n_b, n_chunks),
            in_specs=[
                pl.BlockSpec((t_chunk, Bblk, HM), lambda b, c: (c, b, 0)),  # xall
                pl.BlockSpec((HM, HM), lambda b, c: (0, 0)),                # W_all
            ],
            out_specs=[
                pl.BlockSpec((Bblk, t_chunk * H), lambda b, c: (b, c)),     # h slab
                pl.BlockSpec((Bblk, HM), lambda b, c: (b, 0)),              # final s
            ],
            scratch_shapes=[
                pltpu.VMEM((Bblk, HM), jnp.float32),          # carried [h | m]
            ],
        ),
        compiler_params=pltpu.CompilerParams(
            dimension_semantics=("parallel", "arbitrary"),
            vmem_limit_bytes=32 * 1024 * 1024),
    )(xall, W_all)

    out = out_slab.reshape(Bp, S, H)[:B]   # contiguous reshape, no transpose
    h_fin = s_fin[:B, :H]
    m_fin = s_fin[:B, H:]
    return out, (h_fin, m_fin)


# ----------------------------------------------------------------------------
# Pure-JAX reference (mirrors the PyTorch forward) for correctness checks.
# ----------------------------------------------------------------------------
def lmu_reference(x_bsi, params):
    B, S, I = x_bsi.shape
    H = params["W_x"].shape[0]
    M = params["A"].shape[0]
    h = jnp.zeros((B, H), jnp.float32)
    m = jnp.zeros((B, M), jnp.float32)

    def lin(v, w):  # F.linear(v, w) == v @ w.T
        return jnp.dot(v, w.T, precision=_HIGH)

    outs = []
    for t in range(S):
        x_t = x_bsi[:, t, :]
        u = lin(x_t, params["e_x"]) + lin(h, params["e_h"]) + lin(m, params["e_m"])
        m = lin(m, params["A"]) + lin(u, params["B"])
        h = jnp.tanh(lin(x_t, params["W_x"]) + lin(h, params["W_h"])
                     + lin(m, params["W_m"]))
        outs.append(h)
    out = jnp.stack(outs).transpose(1, 0, 2)
    return out, (h, m)


if __name__ == "__main__":
    input_size = 3
    hidden_size = 32
    memory_size = 32
    theta = 512

    key = jax.random.PRNGKey(0)
    k_param, k_x1, k_x2, k_x3 = jax.random.split(key, 4)
    params = init_params(k_param, input_size, hidden_size, memory_size, theta)

    ref_fn = jax.jit(lmu_reference)

    # (batch, seq, t_chunk): single chunk; multi-chunk carried state;
    # multiple batch blocks (parallel axis) with padding.
    configs = [(2, 8, None), (2, 32, 8), (10, 16, 8)]
    keys = [k_x1, k_x2, k_x3]

    for (bsz, seq, tc), kx in zip(configs, keys):
        x = jax.random.normal(kx, (bsz, seq, input_size), jnp.float32)

        out, (h, m) = lmu_forward(x, params, t_chunk=tc)
        out = jax.block_until_ready(out)
        h = jax.block_until_ready(h)
        m = jax.block_until_ready(m)

        out_ref, (h_ref, m_ref) = ref_fn(x, params)
        out_ref = jax.block_until_ready(out_ref)

        np.testing.assert_allclose(np.asarray(out), np.asarray(out_ref),
                                   rtol=1e-4, atol=2e-4)
        np.testing.assert_allclose(np.asarray(h), np.asarray(h_ref),
                                   rtol=1e-4, atol=2e-4)
        np.testing.assert_allclose(np.asarray(m), np.asarray(m_ref),
                                   rtol=1e-4, atol=2e-4)

    print("KERNEL_OK")
</pallas_src>

<mosaic_0001>
module attributes {stable_mosaic.version = 11 : i64} {
  func.func @lmu_kernel(%arg0: i32, %arg1: i32, %arg2: memref<8x8x64xf32, #tpu.memory_space<vmem>>, %arg3: memref<64x64xf32, #tpu.memory_space<vmem>>, %arg4: memref<8x256xf32, #tpu.memory_space<vmem>>, %arg5: memref<8x64xf32, #tpu.memory_space<vmem>>, %arg6: memref<8x64xf32, #tpu.memory_space<vmem>>) attributes {dimension_semantics = [#tpu.dimension_semantics<parallel>, #tpu.dimension_semantics<arbitrary>], iteration_bounds = array<i64: 1, 1>, scalar_prefetch = 0 : i64, scratch_operands = 1 : i64, tpu.core_type = #tpu.core_type<tc>, window_params = [{transform_indices = @transform_0, window_bounds = array<i64: 8, 8, 64>}, {pipeline_mode = #tpu.pipeline_mode<synchronous>, transform_indices = @transform_1, window_bounds = array<i64: 64, 64>}, {transform_indices = @transform_2, window_bounds = array<i64: 8, 256>}, {transform_indices = @transform_3, window_bounds = array<i64: 8, 64>}]} {
    %c0_i32 = arith.constant 0 : i32
    %0 = arith.cmpi eq, %arg1, %c0_i32 : i32
    %1 = arith.extui %0 : i1 to i32
    %c0_i32_0 = arith.constant 0 : i32
    %2 = arith.cmpi ne, %1, %c0_i32_0 : i32
    scf.if %2 {
      %cst_41 = arith.constant 0.000000e+00 : f32
      %76 = vector.broadcast %cst_41 : f32 to vector<8x64xf32>
      %c0_42 = arith.constant 0 : index
      %c0_43 = arith.constant 0 : index
      %77 = vector.load %arg6[%c0_42, %c0_43] : memref<8x64xf32, #tpu.memory_space<vmem>>, vector<8x64xf32>
      tpu.vector_store %arg6[%c0_42, %c0_43], %76 {strides = array<i32>} : memref<8x64xf32, #tpu.memory_space<vmem>>, vector<8x64xf32>,
    } else {
    }
    %c0 = arith.constant 0 : index
    %c0_1 = arith.constant 0 : index
    %3 = vector.load %arg3[%c0, %c0_1] : memref<64x64xf32, #tpu.memory_space<vmem>>, vector<64x64xf32>
    %c0_2 = arith.constant 0 : index
    %c0_3 = arith.constant 0 : index
    %4 = vector.load %arg6[%c0_2, %c0_3] : memref<8x64xf32, #tpu.memory_space<vmem>>, vector<8x64xf32>
    %5 = tpu.iota {dimensions = array<i32: 1>} : vector<8x64xi32>
    %c32_i32 = arith.constant 32 : i32
    %6 = vector.broadcast %c32_i32 : i32 to vector<8x64xi32>
    %7 = arith.cmpi slt, %5, %6 : vector<8x64xi32>
    %c0_4 = arith.constant 0 : index
    %c0_5 = arith.constant 0 : index
    %c0_6 = arith.constant 0 : index
    %8 = vector.load %arg2[%c0_4, %c0_5, %c0_6] : memref<8x8x64xf32, #tpu.memory_space<vmem>>, vector<1x8x64xf32>
    %9 = vector.shape_cast %8 : vector<1x8x64xf32> to vector<8x64xf32>
    %cst = arith.constant dense<0.000000e+00> : vector<8x64xf32>
    %10 = tpu.matmul %4, %3, %cst {dimension_numbers = #tpu.dot_dimension_numbers<[1], [0], [0], [1], [0, 0, 1, 1], [], []>} : vector<8x64xf32>, vector<64x64xf32>, vector<8x64xf32> -> vector<8x64xf32>
    %11 = arith.addf %9, %10 : vector<8x64xf32>
    %12 = math.tanh %11 : vector<8x64xf32>
    %13 = arith.select %7, %12, %11 : vector<8x64xi1>, vector<8x64xf32>
    %14 = vector.extract_strided_slice %13 {offsets = [0, 0], sizes = [8, 32], strides = [1, 1]} : vector<8x64xf32> to vector<8x32xf32>
    %c0_7 = arith.constant 0 : index
    %c0_8 = arith.constant 0 : index
    %15 = vector.load %arg4[%c0_7, %c0_8] : memref<8x256xf32, #tpu.memory_space<vmem>>, vector<8x32xf32>
    tpu.vector_store %arg4[%c0_7, %c0_8], %14 {strides = array<i32>} : memref<8x256xf32, #tpu.memory_space<vmem>>, vector<8x32xf32>,
    %c1 = arith.constant 1 : index
    %c0_9 = arith.constant 0 : index
    %c0_10 = arith.constant 0 : index
    %16 = vector.load %arg2[%c1, %c0_9, %c0_10] : memref<8x8x64xf32, #tpu.memory_space<vmem>>, vector<1x8x64xf32>
    %17 = vector.shape_cast %16 : vector<1x8x64xf32> to vector<8x64xf32>
    %cst_11 = arith.constant dense<0.000000e+00> : vector<8x64xf32>
    %18 = tpu.matmul %13, %3, %cst_11 {dimension_numbers = #tpu.dot_dimension_numbers<[1], [0], [0], [1], [0, 0, 1, 1], [], []>} : vector<8x64xf32>, vector<64x64xf32>, vector<8x64xf32> -> vector<8x64xf32>
    %19 = arith.addf %17, %18 : vector<8x64xf32>
    %20 = math.tanh %19 : vector<8x64xf32>
    %21 = arith.select %7, %20, %19 : vector<8x64xi1>, vector<8x64xf32>
    %22 = vector.extract_strided_slice %21 {offsets = [0, 0], sizes = [8, 32], strides = [1, 1]} : vector<8x64xf32> to vector<8x32xf32>
    %c0_12 = arith.constant 0 : index
    %c32 = arith.constant 32 : index
    %23 = vector.load %arg4[%c0_12, %c32] : memref<8x256xf32, #tpu.memory_space<vmem>>, vector<8x32xf32>
    tpu.vector_store %arg4[%c0_12, %c32], %22 {strides = array<i32>} : memref<8x256xf32, #tpu.memory_space<vmem>>, vector<8x32xf32>,
    %c2 = arith.constant 2 : index
    %c0_13 = arith.constant 0 : index
    %c0_14 = arith.constant 0 : index
    %24 = vector.load %arg2[%c2, %c0_13, %c0_14] : memref<8x8x64xf32, #tpu.memory_space<vmem>>, vector<1x8x64xf32>
    %25 = vector.shape_cast %24 : vector<1x8x64xf32> to vector<8x64xf32>
    %cst_15 = arith.constant dense<0.000000e+00> : vector<8x64xf32>
    %26 = tpu.matmul %21, %3, %cst_15 {dimension_numbers = #tpu.dot_dimension_numbers<[1], [0], [0], [1], [0, 0, 1, 1], [], []>} : vector<8x64xf32>, vector<64x64xf32>, vector<8x64xf32> -> vector<8x64xf32>
    %27 = arith.addf %25, %26 : vector<8x64xf32>
    %28 = math.tanh %27 : vector<8x64xf32>
    %29 = arith.select %7, %28, %27 : vector<8x64xi1>, vector<8x64xf32>
    %30 = vector.extract_strided_slice %29 {offsets = [0, 0], sizes = [8, 32], strides = [1, 1]} : vector<8x64xf32> to vector<8x32xf32>
    %c0_16 = arith.constant 0 : index
    %c64 = arith.constant 64 : index
    %31 = vector.load %arg4[%c0_16, %c64] : memref<8x256xf32, #tpu.memory_space<vmem>>, vector<8x32xf32>
    tpu.vector_store %arg4[%c0_16, %c64], %30 {strides = array<i32>} : memref<8x256xf32, #tpu.memory_space<vmem>>, vector<8x32xf32>,
    %c3 = arith.constant 3 : index
    %c0_17 = arith.constant 0 : index
    %c0_18 = arith.constant 0 : index
    %32 = vector.load %arg2[%c3, %c0_17, %c0_18] : memref<8x8x64xf32, #tpu.memory_space<vmem>>, vector<1x8x64xf32>
    %33 = vector.shape_cast %32 : vector<1x8x64xf32> to vector<8x64xf32>
    %cst_19 = arith.constant dense<0.000000e+00> : vector<8x64xf32>
    %34 = tpu.matmul %29, %3, %cst_19 {dimension_numbers = #tpu.dot_dimension_numbers<[1], [0], [0], [1], [0, 0, 1, 1], [], []>} : vector<8x64xf32>, vector<64x64xf32>, vector<8x64xf32> -> vector<8x64xf32>
    %35 = arith.addf %33, %34 : vector<8x64xf32>
    %36 = math.tanh %35 : vector<8x64xf32>
    %37 = arith.select %7, %36, %35 : vector<8x64xi1>, vector<8x64xf32>
    %38 = vector.extract_strided_slice %37 {offsets = [0, 0], sizes = [8, 32], strides = [1, 1]} : vector<8x64xf32> to vector<8x32xf32>
    %c0_20 = arith.constant 0 : index
    %c96 = arith.constant 96 : index
    %39 = vector.load %arg4[%c0_20, %c96] : memref<8x256xf32, #tpu.memory_space<vmem>>, vector<8x32xf32>
    tpu.vector_store %arg4[%c0_20, %c96], %38 {strides = array<i32>} : memref<8x256xf32, #tpu.memory_space<vmem>>, vector<8x32xf32>,
    %c4 = arith.constant 4 : index
    %c0_21 = arith.constant 0 : index
    %c0_22 = arith.constant 0 : index
    %40 = vector.load %arg2[%c4, %c0_21, %c0_22] : memref<8x8x64xf32, #tpu.memory_space<vmem>>, vector<1x8x64xf32>
    %41 = vector.shape_cast %40 : vector<1x8x64xf32> to vector<8x64xf32>
    %cst_23 = arith.constant dense<0.000000e+00> : vector<8x64xf32>
    %42 = tpu.matmul %37, %3, %cst_23 {dimension_numbers = #tpu.dot_dimension_numbers<[1], [0], [0], [1], [0, 0, 1, 1], [], []>} : vector<8x64xf32>, vector<64x64xf32>, vector<8x64xf32> -> vector<8x64xf32>
    %43 = arith.addf %41, %42 : vector<8x64xf32>
    %44 = math.tanh %43 : vector<8x64xf32>
    %45 = arith.select %7, %44, %43 : vector<8x64xi1>, vector<8x64xf32>
    %46 = vector.extract_strided_slice %45 {offsets = [0, 0], sizes = [8, 32], strides = [1, 1]} : vector<8x64xf32> to vector<8x32xf32>
    %c0_24 = arith.constant 0 : index
    %c128 = arith.constant 128 : index
    %47 = vector.load %arg4[%c0_24, %c128] : memref<8x256xf32, #tpu.memory_space<vmem>>, vector<8x32xf32>
    tpu.vector_store %arg4[%c0_24, %c128], %46 {strides = array<i32>} : memref<8x256xf32, #tpu.memory_space<vmem>>, vector<8x32xf32>,
    %c5 = arith.constant 5 : index
    %c0_25 = arith.constant 0 : index
    %c0_26 = arith.constant 0 : index
    %48 = vector.load %arg2[%c5, %c0_25, %c0_26] : memref<8x8x64xf32, #tpu.memory_space<vmem>>, vector<1x8x64xf32>
    %49 = vector.shape_cast %48 : vector<1x8x64xf32> to vector<8x64xf32>
    %cst_27 = arith.constant dense<0.000000e+00> : vector<8x64xf32>
    %50 = tpu.matmul %45, %3, %cst_27 {dimension_numbers = #tpu.dot_dimension_numbers<[1], [0], [0], [1], [0, 0, 1, 1], [], []>} : vector<8x64xf32>, vector<64x64xf32>, vector<8x64xf32> -> vector<8x64xf32>
    %51 = arith.addf %49, %50 : vector<8x64xf32>
    %52 = math.tanh %51 : vector<8x64xf32>
    %53 = arith.select %7, %52, %51 : vector<8x64xi1>, vector<8x64xf32>
    %54 = vector.extract_strided_slice %53 {offsets = [0, 0], sizes = [8, 32], strides = [1, 1]} : vector<8x64xf32> to vector<8x32xf32>
    %c0_28 = arith.constant 0 : index
    %c160 = arith.constant 160 : index
    %55 = vector.load %arg4[%c0_28, %c160] : memref<8x256xf32, #tpu.memory_space<vmem>>, vector<8x32xf32>
    tpu.vector_store %arg4[%c0_28, %c160], %54 {strides = array<i32>} : memref<8x256xf32, #tpu.memory_space<vmem>>, vector<8x32xf32>,
    %c6 = arith.constant 6 : index
    %c0_29 = arith.constant 0 : index
    %c0_30 = arith.constant 0 : index
    %56 = vector.load %arg2[%c6, %c0_29, %c0_30] : memref<8x8x64xf32, #tpu.memory_space<vmem>>, vector<1x8x64xf32>
    %57 = vector.shape_cast %56 : vector<1x8x64xf32> to vector<8x64xf32>
    %cst_31 = arith.constant dense<0.000000e+00> : vector<8x64xf32>
    %58 = tpu.matmul %53, %3, %cst_31 {dimension_numbers = #tpu.dot_dimension_numbers<[1], [0], [0], [1], [0, 0, 1, 1], [], []>} : vector<8x64xf32>, vector<64x64xf32>, vector<8x64xf32> -> vector<8x64xf32>
    %59 = arith.addf %57, %58 : vector<8x64xf32>
    %60 = math.tanh %59 : vector<8x64xf32>
    %61 = arith.select %7, %60, %59 : vector<8x64xi1>, vector<8x64xf32>
    %62 = vector.extract_strided_slice %61 {offsets = [0, 0], sizes = [8, 32], strides = [1, 1]} : vector<8x64xf32> to vector<8x32xf32>
    %c0_32 = arith.constant 0 : index
    %c192 = arith.constant 192 : index
    %63 = vector.load %arg4[%c0_32, %c192] : memref<8x256xf32, #tpu.memory_space<vmem>>, vector<8x32xf32>
    tpu.vector_store %arg4[%c0_32, %c192], %62 {strides = array<i32>} : memref<8x256xf32, #tpu.memory_space<vmem>>, vector<8x32xf32>,
    %c7 = arith.constant 7 : index
    %c0_33 = arith.constant 0 : index
    %c0_34 = arith.constant 0 : index
    %64 = vector.load %arg2[%c7, %c0_33, %c0_34] : memref<8x8x64xf32, #tpu.memory_space<vmem>>, vector<1x8x64xf32>
    %65 = vector.shape_cast %64 : vector<1x8x64xf32> to vector<8x64xf32>
    %cst_35 = arith.constant dense<0.000000e+00> : vector<8x64xf32>
    %66 = tpu.matmul %61, %3, %cst_35 {dimension_numbers = #tpu.dot_dimension_numbers<[1], [0], [0], [1], [0, 0, 1, 1], [], []>} : vector<8x64xf32>, vector<64x64xf32>, vector<8x64xf32> -> vector<8x64xf32>
    %67 = arith.addf %65, %66 : vector<8x64xf32>
    %68 = math.tanh %67 : vector<8x64xf32>
    %69 = arith.select %7, %68, %67 : vector<8x64xi1>, vector<8x64xf32>
    %70 = vector.extract_strided_slice %69 {offsets = [0, 0], sizes = [8, 32], strides = [1, 1]} : vector<8x64xf32> to vector<8x32xf32>
    %c0_36 = arith.constant 0 : index
    %c224 = arith.constant 224 : index
    %71 = vector.load %arg4[%c0_36, %c224] : memref<8x256xf32, #tpu.memory_space<vmem>>, vector<8x32xf32>
    tpu.vector_store %arg4[%c0_36, %c224], %70 {strides = array<i32>} : memref<8x256xf32, #tpu.memory_space<vmem>>, vector<8x32xf32>,
    %c0_37 = arith.constant 0 : index
    %c0_38 = arith.constant 0 : index
    %72 = vector.load %arg6[%c0_37, %c0_38] : memref<8x64xf32, #tpu.memory_space<vmem>>, vector<8x64xf32>
    tpu.vector_store %arg6[%c0_37, %c0_38], %69 {strides = array<i32>} : memref<8x64xf32, #tpu.memory_space<vmem>>, vector<8x64xf32>,
    %c0_i32_39 = arith.constant 0 : i32
    %73 = arith.cmpi eq, %arg1, %c0_i32_39 : i32
    %74 = arith.extui %73 : i1 to i32
    %c0_i32_40 = arith.constant 0 : i32
    %75 = arith.cmpi ne, %74, %c0_i32_40 : i32
    scf.if %75 {
      %c0_41 = arith.constant 0 : index
      %c0_42 = arith.constant 0 : index
      %76 = vector.load %arg5[%c0_41, %c0_42] : memref<8x64xf32, #tpu.memory_space<vmem>>, vector<8x64xf32>
      tpu.vector_store %arg5[%c0_41, %c0_42], %69 {strides = array<i32>} : memref<8x64xf32, #tpu.memory_space<vmem>>, vector<8x64xf32>,
    } else {
    }
    return
  }
  func.func @transform_0(%arg0: i32, %arg1: i32) -> (i32, i32, i32) {
    %c0_i32 = arith.constant 0 : i32
    %c0_i32_0 = arith.constant 0 : i32
    return %arg1, %arg0, %c0_i32 : i32, i32, i32
  }
  func.func @transform_1(%arg0: i32, %arg1: i32) -> (i32, i32) {
    %c0_i32 = arith.constant 0 : i32
    %c0_i32_0 = arith.constant 0 : i32
    %c0_i32_1 = arith.constant 0 : i32
    return %c0_i32, %c0_i32_0 : i32, i32
  }
  func.func @transform_2(%arg0: i32, %arg1: i32) -> (i32, i32) {
    %c0_i32 = arith.constant 0 : i32
    return %arg0, %arg1 : i32, i32
  }
  func.func @transform_3(%arg0: i32, %arg1: i32) -> (i32, i32) {
    %c0_i32 = arith.constant 0 : i32
    %c0_i32_0 = arith.constant 0 : i32
    return %arg0, %c0_i32 : i32, i32
  }
}

</mosaic_0001>

<llo_original>
// kernel: tpu_custom_call.1
$region0: #{tpu_custom_call.1}
  #allocation0 [shape = 'u32[]', space=smem, size = 0x4, offset = 0x4, fixed_abs, tag = 'smem constant byte address 0x4 - core index']
  #allocation1 [shape = 'u32[144,128]{1,0:T(1,128)}', space=vmem, size = 0x12000, scoped, tag = 'internal scratch']
  #allocation2 [shape = 'f32[8,64]{1,0:T(8,128)}', space=vmem, size = 0x1000, scoped, tag = 'scratch operand']
  %s0 = inlined_call_operand.hbm [shape: f32[8,8,64], index: 0, kind: input, shape index: {}]
  %s1 = inlined_call_operand.hbm [shape: f32[64,64], index: 1, kind: input, shape index: {}]
  %s2 = inlined_call_operand.hbm [shape: f32[8,256], index: 2, kind: output, shape index: {0}]
  %s3 = inlined_call_operand.hbm [shape: f32[8,64], index: 3, kind: output, shape index: {1}]
  %4 = xla_tuple %s2, %s3
  %s5 = sld [smem:[#allocation0]]
  $region42: #{tpu_custom_call.1} parent=0
    _
  %s7 = ssub.s32 1, %s5
  %s8 = scalar_select 0, %s7, %s5
  $region1: #{tpu_custom_call.1} parent=0
    #allocation3 [shape = 'u8[32768]{0}', space=vmem, size = 0x8000, scoped, tag = 'input window, operand 0, single buffered']
    #allocation4 [shape = 's32[1]{0}', space=sflag, size = 0x4, scoped, tag = 'scoped memory for tpu_custom_call.1']
    #allocation5 [shape = 's32[1]{0}', space=sflag, size = 0x4, scoped, tag = 'scoped memory for tpu_custom_call.1']
    #allocation6 [shape = 'u8[32768]{0}', space=vmem, size = 0x8000, scoped, tag = 'input window, operand 1, single buffered']
    #allocation7 [shape = 's32[1]{0}', space=sflag, size = 0x4, scoped, tag = 'scoped memory for tpu_custom_call.1']
    #allocation8 [shape = 'u8[8192]{0}', space=vmem, size = 0x2000, scoped, tag = 'output window, operand 0, single buffered']
    #allocation9 [shape = 'u8[4096]{0}', space=vmem, size = 0x1000, scoped, tag = 'output window, operand 1, single buffered']
    #allocation10 [shape = 's32[1]{0}', space=sflag, size = 0x4, scoped, tag = 'scoped memory for tpu_custom_call.1']
    %9 = vsyncpa [#allocation4], 0
    %10 = vsyncpa [#allocation7], 0
    %11 = vsyncpa [#allocation5], 0
    %12 = vsyncpa [#allocation10], 0
    // Predicated region
    $region2: #{tpu_custom_call.1} parent=1 // pred_check
      _
    $region3: #{tpu_custom_call.1} parent=1 // pred_check_branch
      %14 = sbr.rel (0) target = $region5
    $region4: #{tpu_custom_call.1} parent=1 // pred_region
      %s16 = ssub.s32 1024, 1024
      %17 = vsyncadd [#allocation4], %s16
      %s18 = sshll.u32 [#allocation3], 4
      %s19 = int_to_ptr.vmem [resolvable:$true] %s18
      %24 = dma.hbm_to_vmem [thread:$0]  %s0, 1024, %s19, [#allocation4], 128, 128, 8
    $region5: #{tpu_custom_call.1} parent=1 // pred_fallthru
      _
    // Predicated region
    $region6: #{tpu_custom_call.1} parent=1 // pred_check
      _
    $region7: #{tpu_custom_call.1} parent=1 // pred_check_branch
      %26 = sbr.rel (0) target = $region9
    $region8: #{tpu_custom_call.1} parent=1 // pred_region
      %s28 = ssub.s32 1024, 1024
      %29 = vsyncadd [#allocation7], %s28
      %s30 = sshll.u32 [#allocation6], 4
      %s31 = int_to_ptr.vmem [resolvable:$true] %s30
      %36 = dma.hbm_to_vmem [thread:$0]  %s1, 1024, %s31, [#allocation7], 128, 128, 8
    $region9: #{tpu_custom_call.1} parent=1 // pred_fallthru
      _
    // Predicated region
    $region10: #{tpu_custom_call.1} parent=1 // pred_check
      _
    $region11: #{tpu_custom_call.1} parent=1 // pred_check_branch
      %38 = sbr.rel (0) target = $region13
    $region12: #{tpu_custom_call.1} parent=1 // pred_region
      %39 = dma.done [#allocation4], 1024
    $region13: #{tpu_custom_call.1} parent=1 // pred_fallthru
      _
    // Predicated region
    $region14: #{tpu_custom_call.1} parent=1 // pred_check
      _
    $region15: #{tpu_custom_call.1} parent=1 // pred_check_branch
      %41 = sbr.rel (0) target = $region17
    $region16: #{tpu_custom_call.1} parent=1 // pred_region
      %42 = dma.done [#allocation7], 1024
    $region17: #{tpu_custom_call.1} parent=1 // pred_fallthru
      _
    %p43 = scmp.eq.s32.totalorder 0, 0
    // Predicated region
    $region18: #{tpu_custom_call.1} parent=1 // pred_check
      %p44 = pneg %p43
    $region19: #{tpu_custom_call.1} parent=1 // pred_check_branch
      %46 = sbr.rel (%p44) target = $region21
    $region20: #{tpu_custom_call.1} parent=1 // pred_region
      %vm47 = vcmask 523264
      %48 = vst.msk [vmem:[#allocation2] sm:$0xff] %vm47, 0.0
    $region21: #{tpu_custom_call.1} parent=1 // pred_fallthru
      _
    %v49 = vld [vmem:[#allocation6] sm:$0xff]
    %v50 = vld [vmem:[#allocation6 + $0x8] sm:$0xff]
    %v51 = vld [vmem:[#allocation6 + $0x10] sm:$0xff]
    %v52 = vld [vmem:[#allocation6 + $0x18] sm:$0xff]
    %v53 = vld [vmem:[#allocation6 + $0x20] sm:$0xff]
    %v54 = vld [vmem:[#allocation6 + $0x28] sm:$0xff]
    %v55 = vld [vmem:[#allocation6 + $0x30] sm:$0xff]
    %v56 = vld [vmem:[#allocation6 + $0x38] sm:$0xff]
    %v57 = vld [vmem:[#allocation2] sm:$0xff]
    %v58 = vlaneseq
    %v59 = vand.u32 %v58, 127
    %vm60 = vcmp.lt.s32.totalorder %v59, 32
    %v61 = vld [vmem:[#allocation3] sm:$0xff]
    %vm62 = vcmask 523264
    %v64 = vsel %vm62, %v57, 0
    %66 = vmatprep.subr.mxu0 0.0
    %67 = vmatpush1.msra.mxu0 %v49
    %68 = vmatprep.subr.mxu0 0.0
    %69 = vmatpush1.msra.mxu0 %v50
    %70 = vmatprep.subr.mxu0 0.0
    %71 = vmatpush1.msra.mxu0 %v51
    %72 = vmatprep.subr.mxu0 0.0
    %73 = vmatpush1.msra.mxu0 %v52
    %74 = vmatprep.subr.mxu0 0.0
    %75 = vmatpush1.msra.mxu0 %v53
    %76 = vmatprep.subr.mxu0 0.0
    %77 = vmatpush1.msra.mxu0 %v54
    %78 = vmatprep.subr.mxu0 0.0
    %79 = vmatpush1.msra.mxu0 %v55
    %80 = vmatprep.subr.mxu0 0.0
    %81 = vmatpush1.msra.mxu0 %v56
    %82 = vmatprep.subr.mxu0 0.0
    %83 = vmatpush1.msra.mxu0 0.0
    %84 = vmatprep.subr.mxu0 0.0
    %85 = vmatpush1.msra.mxu0 0.0
    %86 = vmatprep.subr.mxu0 0.0
    %87 = vmatpush1.msra.mxu0 0.0
    %88 = vmatprep.subr.mxu0 0.0
    %89 = vmatpush1.msra.mxu0 0.0
    %90 = vmatprep.subr.mxu0 0.0
    %91 = vmatpush1.msra.mxu0 0.0
    %92 = vmatprep.subr.mxu0 0.0
    %93 = vmatpush1.msra.mxu0 0.0
    %94 = vmatprep.subr.mxu0 0.0
    %95 = vmatpush1.msra.mxu0 0.0
    %96 = vmatprep.subr.mxu0 0.0
    %97 = vmatpush1.msra.mxu0 0.0
    %98 = vmatprep.subr.mxu0 0.0
    %99 = vmatpush1.msra.mxu0 0.0
    %100 = vmatprep.subr.mxu0 0.0
    %101 = vmatpush1.msra.mxu0 0.0
    %102 = vmatprep.subr.mxu0 0.0
    %103 = vmatpush1.msra.mxu0 0.0
    %104 = vmatprep.subr.mxu0 0.0
    %105 = vmatpush1.msra.mxu0 0.0
    %106 = vmatprep.subr.mxu0 0.0
    %107 = vmatpush1.msra.mxu0 0.0
    %108 = vmatprep.subr.mxu0 0.0
    %109 = vmatpush1.msra.mxu0 0.0
    %110 = vmatprep.subr.mxu0 0.0
    %111 = vmatpush1.msra.mxu0 0.0
    %112 = vmatprep.subr.mxu0 0.0
    %113 = vmatpush1.msra.mxu0 0.0
    %114 = vmatprep.subr.mxu0 0.0
    %115 = vmatpush1.msra.mxu0 0.0
    %116 = vmatprep.subr.mxu0 0.0
    %117 = vmatpush1.msra.mxu0 0.0
    %118 = vmatprep.subr.mxu0 0.0
    %119 = vmatpush1.msra.mxu0 0.0
    %120 = vmatprep.subr.mxu0 0.0
    %121 = vmatpush1.msra.mxu0 0.0
    %122 = vmatprep.subr.mxu0 0.0
    %123 = vmatpush1.msra.mxu0 0.0
    %124 = vmatprep.subr.mxu0 0.0
    %125 = vmatpush1.msra.mxu0 0.0
    %126 = vmatprep.subr.mxu0 0.0
    %127 = vmatpush1.msra.mxu0 0.0
    %128 = vmatprep.subr.mxu0 0.0
    %129 = vmatpush1.msra.mxu0 0.0
    %130 = vmatprep.mubr.f32.mxu0 0.0
    %131 = vmatmul.mubr.f32.gmra.mrb[0].mxu0 %v64
    %v132 = vpop.f32.mrb[0].mxu0
    %v133 = vadd.f32 0.0, %v132
    %v134 = vpop.f32.mrb[0].mxu0
    %135 = vdwg.mxu0
    %v136 = vadd.f32 %v61, %v133
    %v137 = vtanh.pop %v136
    %v138 = vsel %vm60, %v137, %v136
    %vm139 = vcmask 261120
    %140 = vst.msk [vmem:[#allocation8] sm:$0xff] %vm139, %v138
    %s141 = scalar_lea.vmem [#allocation3], 8
    %v142 = vld [vmem:[%s141] sm:$0xff]
    %v144 = vsel %vm62, %v138, 0
    %146 = vmatprep.subr.mxu0 0.0
    %147 = vmatpush1.msra.mxu0 %v49
    %148 = vmatprep.subr.mxu0 0.0
    %149 = vmatpush1.msra.mxu0 %v50
    %150 = vmatprep.subr.mxu0 0.0
    %151 = vmatpush1.msra.mxu0 %v51
    %152 = vmatprep.subr.mxu0 0.0
    %153 = vmatpush1.msra.mxu0 %v52
    %154 = vmatprep.subr.mxu0 0.0
    %155 = vmatpush1.msra.mxu0 %v53
    %156 = vmatprep.subr.mxu0 0.0
    %157 = vmatpush1.msra.mxu0 %v54
    %158 = vmatprep.subr.mxu0 0.0
    %159 = vmatpush1.msra.mxu0 %v55
    %160 = vmatprep.subr.mxu0 0.0
    %161 = vmatpush1.msra.mxu0 %v56
    %162 = vmatprep.subr.mxu0 0.0
    %163 = vmatpush1.msra.mxu0 0.0
    %164 = vmatprep.subr.mxu0 0.0
    %165 = vmatpush1.msra.mxu0 0.0
    %166 = vmatprep.subr.mxu0 0.0
    %167 = vmatpush1.msra.mxu0 0.0
    %168 = vmatprep.subr.mxu0 0.0
    %169 = vmatpush1.msra.mxu0 0.0
    %170 = vmatprep.subr.mxu0 0.0
    %171 = vmatpush1.msra.mxu0 0.0
    %172 = vmatprep.subr.mxu0 0.0
    %173 = vmatpush1.msra.mxu0 0.0
    %174 = vmatprep.subr.mxu0 0.0
    %175 = vmatpush1.msra.mxu0 0.0
    %176 = vmatprep.subr.mxu0 0.0
    %177 = vmatpush1.msra.mxu0 0.0
    %178 = vmatprep.subr.mxu0 0.0
    %179 = vmatpush1.msra.mxu0 0.0
    %180 = vmatprep.subr.mxu0 0.0
    %181 = vmatpush1.msra.mxu0 0.0
    %182 = vmatprep.subr.mxu0 0.0
    %183 = vmatpush1.msra.mxu0 0.0
    %184 = vmatprep.subr.mxu0 0.0
    %185 = vmatpush1.msra.mxu0 0.0
    %186 = vmatprep.subr.mxu0 0.0
    %187 = vmatpush1.msra.mxu0 0.0
    %188 = vmatprep.subr.mxu0 0.0
    %189 = vmatpush1.msra.mxu0 0.0
    %190 = vmatprep.subr.mxu0 0.0
    %191 = vmatpush1.msra.mxu0 0.0
    %192 = vmatprep.subr.mxu0 0.0
    %193 = vmatpush1.msra.mxu0 0.0
    %194 = vmatprep.subr.mxu0 0.0
    %195 = vmatpush1.msra.mxu0 0.0
    %196 = vmatprep.subr.mxu0 0.0
    %197 = vmatpush1.msra.mxu0 0.0
    %198 = vmatprep.subr.mxu0 0.0
    %199 = vmatpush1.msra.mxu0 0.0
    %200 = vmatprep.subr.mxu0 0.0
    %201 = vmatpush1.msra.mxu0 0.0
    %202 = vmatprep.subr.mxu0 0.0
    %203 = vmatpush1.msra.mxu0 0.0
    %204 = vmatprep.subr.mxu0 0.0
    %205 = vmatpush1.msra.mxu0 0.0
    %206 = vmatprep.subr.mxu0 0.0
    %207 = vmatpush1.msra.mxu0 0.0
    %208 = vmatprep.subr.mxu0 0.0
    %209 = vmatpush1.msra.mxu0 0.0
    %210 = vmatprep.mubr.f32.mxu0 0.0
    %211 = vmatmul.mubr.f32.gmra.mrb[0].mxu0 %v144
    %v212 = vpop.f32.mrb[0].mxu0
    %v213 = vadd.f32 0.0, %v212
    %v214 = vpop.f32.mrb[0].mxu0
    %215 = vdwg.mxu0
    %v216 = vadd.f32 %v142, %v213
    %v217 = vtanh.pop %v216
    %v218 = vsel %vm60, %v217, %v216
    %220 = vrot.lane.b32.xlu0 %v218, 32
    %v221 = vpop.permute.xlu0 %220
    %vm223 = vcmask 523520
    %224 = vst.msk [vmem:[#allocation8] sm:$0xff] %vm223, %v221
    %s225 = scalar_lea.vmem [#allocation3], 16
    %v226 = vld [vmem:[%s225] sm:$0xff]
    %v227 = vsel %vm62, %v218, 0
    %229 = vmatprep.subr.mxu0 0.0
    %230 = vmatpush1.msra.mxu0 %v49
    %231 = vmatprep.subr.mxu0 0.0
    %232 = vmatpush1.msra.mxu0 %v50
    %233 = vmatprep.subr.mxu0 0.0
    %234 = vmatpush1.msra.mxu0 %v51
    %235 = vmatprep.subr.mxu0 0.0
    %236 = vmatpush1.msra.mxu0 %v52
    %237 = vmatprep.subr.mxu0 0.0
    %238 = vmatpush1.msra.mxu0 %v53
    %239 = vmatprep.subr.mxu0 0.0
    %240 = vmatpush1.msra.mxu0 %v54
    %241 = vmatprep.subr.mxu0 0.0
    %242 = vmatpush1.msra.mxu0 %v55
    %243 = vmatprep.subr.mxu0 0.0
    %244 = vmatpush1.msra.mxu0 %v56
    %245 = vmatprep.subr.mxu0 0.0
    %246 = vmatpush1.msra.mxu0 0.0
    %247 = vmatprep.subr.mxu0 0.0
    %248 = vmatpush1.msra.mxu0 0.0
    %249 = vmatprep.subr.mxu0 0.0
    %250 = vmatpush1.msra.mxu0 0.0
    %251 = vmatprep.subr.mxu0 0.0
    %252 = vmatpush1.msra.mxu0 0.0
    %253 = vmatprep.subr.mxu0 0.0
    %254 = vmatpush1.msra.mxu0 0.0
    %255 = vmatprep.subr.mxu0 0.0
    %256 = vmatpush1.msra.mxu0 0.0
    %257 = vmatprep.subr.mxu0 0.0
    %258 = vmatpush1.msra.mxu0 0.0
    %259 = vmatprep.subr.mxu0 0.0
    %260 = vmatpush1.msra.mxu0 0.0
    %261 = vmatprep.subr.mxu0 0.0
    %262 = vmatpush1.msra.mxu0 0.0
    %263 = vmatprep.subr.mxu0 0.0
    %264 = vmatpush1.msra.mxu0 0.0
    %265 = vmatprep.subr.mxu0 0.0
    %266 = vmatpush1.msra.mxu0 0.0
    %267 = vmatprep.subr.mxu0 0.0
    %268 = vmatpush1.msra.mxu0 0.0
    %269 = vmatprep.subr.mxu0 0.0
    %270 = vmatpush1.msra.mxu0 0.0
    %271 = vmatprep.subr.mxu0 0.0
    %272 = vmatpush1.msra.mxu0 0.0
    %273 = vmatprep.subr.mxu0 0.0
    %274 = vmatpush1.msra.mxu0 0.0
    %275 = vmatprep.subr.mxu0 0.0
    %276 = vmatpush1.msra.mxu0 0.0
    %277 = vmatprep.subr.mxu0 0.0
    %278 = vmatpush1.msra.mxu0 0.0
    %279 = vmatprep.subr.mxu0 0.0
    %280 = vmatpush1.msra.mxu0 0.0
    %281 = vmatprep.subr.mxu0 0.0
    %282 = vmatpush1.msra.mxu0 0.0
    %283 = vmatprep.subr.mxu0 0.0
    %284 = vmatpush1.msra.mxu0 0.0
    %285 = vmatprep.subr.mxu0 0.0
    %286 = vmatpush1.msra.mxu0 0.0
    %287 = vmatprep.subr.mxu0 0.0
    %288 = vmatpush1.msra.mxu0 0.0
    %289 = vmatprep.subr.mxu0 0.0
    %290 = vmatpush1.msra.mxu0 0.0
    %291 = vmatprep.subr.mxu0 0.0
    %292 = vmatpush1.msra.mxu0 0.0
    %293 = vmatprep.mubr.f32.mxu0 0.0
    %294 = vmatmul.mubr.f32.gmra.mrb[0].mxu0 %v227
    %v295 = vpop.f32.mrb[0].mxu0
    %v296 = vadd.f32 0.0, %v295
    %v297 = vpop.f32.mrb[0].mxu0
    %298 = vdwg.mxu0
    %v299 = vadd.f32 %v226, %v296
    %v300 = vtanh.pop %v299
    %v301 = vsel %vm60, %v300, %v299
    %303 = vrot.lane.b32.xlu0 %v301, 64
    %v304 = vpop.permute.xlu0 %303
    %vm306 = vcmask 785920
    %307 = vst.msk [vmem:[#allocation8] sm:$0xff] %vm306, %v304
    %s308 = scalar_lea.vmem [#allocation3], 24
    %v309 = vld [vmem:[%s308] sm:$0xff]
    %v310 = vsel %vm62, %v301, 0
    %312 = vmatprep.subr.mxu0 0.0
    %313 = vmatpush1.msra.mxu0 %v49
    %314 = vmatprep.subr.mxu0 0.0
    %315 = vmatpush1.msra.mxu0 %v50
    %316 = vmatprep.subr.mxu0 0.0
    %317 = vmatpush1.msra.mxu0 %v51
    %318 = vmatprep.subr.mxu0 0.0
    %319 = vmatpush1.msra.mxu0 %v52
    %320 = vmatprep.subr.mxu0 0.0
    %321 = vmatpush1.msra.mxu0 %v53
    %322 = vmatprep.subr.mxu0 0.0
    %323 = vmatpush1.msra.mxu0 %v54
    %324 = vmatprep.subr.mxu0 0.0
    %325 = vmatpush1.msra.mxu0 %v55
    %326 = vmatprep.subr.mxu0 0.0
    %327 = vmatpush1.msra.mxu0 %v56
    %328 = vmatprep.subr.mxu0 0.0
    %329 = vmatpush1.msra.mxu0 0.0
    %330 = vmatprep.subr.mxu0 0.0
    %331 = vmatpush1.msra.mxu0 0.0
    %332 = vmatprep.subr.mxu0 0.0
    %333 = vmatpush1.msra.mxu0 0.0
    %334 = vmatprep.subr.mxu0 0.0
    %335 = vmatpush1.msra.mxu0 0.0
    %336 = vmatprep.subr.mxu0 0.0
    %337 = vmatpush1.msra.mxu0 0.0
    %338 = vmatprep.subr.mxu0 0.0
    %339 = vmatpush1.msra.mxu0 0.0
    %340 = vmatprep.subr.mxu0 0.0
    %341 = vmatpush1.msra.mxu0 0.0
    %342 = vmatprep.subr.mxu0 0.0
    %343 = vmatpush1.msra.mxu0 0.0
    %344 = vmatprep.subr.mxu0 0.0
    %345 = vmatpush1.msra.mxu0 0.0
    %346 = vmatprep.subr.mxu0 0.0
    %347 = vmatpush1.msra.mxu0 0.0
    %348 = vmatprep.subr.mxu0 0.0
    %349 = vmatpush1.msra.mxu0 0.0
    %350 = vmatprep.subr.mxu0 0.0
    %351 = vmatpush1.msra.mxu0 0.0
    %352 = vmatprep.subr.mxu0 0.0
    %353 = vmatpush1.msra.mxu0 0.0
    %354 = vmatprep.subr.mxu0 0.0
    %355 = vmatpush1.msra.mxu0 0.0
    %356 = vmatprep.subr.mxu0 0.0
    %357 = vmatpush1.msra.mxu0 0.0
    %358 = vmatprep.subr.mxu0 0.0
    %359 = vmatpush1.msra.mxu0 0.0
    %360 = vmatprep.subr.mxu0 0.0
    %361 = vmatpush1.msra.mxu0 0.0
    %362 = vmatprep.subr.mxu0 0.0
    %363 = vmatpush1.msra.mxu0 0.0
    %364 = vmatprep.subr.mxu0 0.0
    %365 = vmatpush1.msra.mxu0 0.0
    %366 = vmatprep.subr.mxu0 0.0
    %367 = vmatpush1.msra.mxu0 0.0
    %368 = vmatprep.subr.mxu0 0.0
    %369 = vmatpush1.msra.mxu0 0.0
    %370 = vmatprep.subr.mxu0 0.0
    %371 = vmatpush1.msra.mxu0 0.0
    %372 = vmatprep.subr.mxu0 0.0
    %373 = vmatpush1.msra.mxu0 0.0
    %374 = vmatprep.subr.mxu0 0.0
    %375 = vmatpush1.msra.mxu0 0.0
    %376 = vmatprep.mubr.f32.mxu0 0.0
    %377 = vmatmul.mubr.f32.gmra.mrb[0].mxu0 %v310
    %v378 = vpop.f32.mrb[0].mxu0
    %v379 = vadd.f32 0.0, %v378
    %v380 = vpop.f32.mrb[0].mxu0
    %381 = vdwg.mxu0
    %v382 = vadd.f32 %v309, %v379
    %v383 = vtanh.pop %v382
    %v384 = vsel %vm60, %v383, %v382
    %386 = vrot.lane.b32.xlu0 %v384, 96
    %v387 = vpop.permute.xlu0 %386
    %vm389 = vcmask 1048320
    %390 = vst.msk [vmem:[#allocation8] sm:$0xff] %vm389, %v387
    %s391 = scalar_lea.vmem [#allocation3], 32
    %v392 = vld [vmem:[%s391] sm:$0xff]
    %v393 = vsel %vm62, %v384, 0
    %395 = vmatprep.subr.mxu0 0.0
    %396 = vmatpush1.msra.mxu0 %v49
    %397 = vmatprep.subr.mxu0 0.0
    %398 = vmatpush1.msra.mxu0 %v50
    %399 = vmatprep.subr.mxu0 0.0
    %400 = vmatpush1.msra.mxu0 %v51
    %401 = vmatprep.subr.mxu0 0.0
    %402 = vmatpush1.msra.mxu0 %v52
    %403 = vmatprep.subr.mxu0 0.0
    %404 = vmatpush1.msra.mxu0 %v53
    %405 = vmatprep.subr.mxu0 0.0
    %406 = vmatpush1.msra.mxu0 %v54
    %407 = vmatprep.subr.mxu0 0.0
    %408 = vmatpush1.msra.mxu0 %v55
    %409 = vmatprep.subr.mxu0 0.0
    %410 = vmatpush1.msra.mxu0 %v56
    %411 = vmatprep.subr.mxu0 0.0
    %412 = vmatpush1.msra.mxu0 0.0
    %413 = vmatprep.subr.mxu0 0.0
    %414 = vmatpush1.msra.mxu0 0.0
    %415 = vmatprep.subr.mxu0 0.0
    %416 = vmatpush1.msra.mxu0 0.0
    %417 = vmatprep.subr.mxu0 0.0
    %418 = vmatpush1.msra.mxu0 0.0
    %419 = vmatprep.subr.mxu0 0.0
    %420 = vmatpush1.msra.mxu0 0.0
    %421 = vmatprep.subr.mxu0 0.0
    %422 = vmatpush1.msra.mxu0 0.0
    %423 = vmatprep.subr.mxu0 0.0
    %424 = vmatpush1.msra.mxu0 0.0
    %425 = vmatprep.subr.mxu0 0.0
    %426 = vmatpush1.msra.mxu0 0.0
    %427 = vmatprep.subr.mxu0 0.0
    %428 = vmatpush1.msra.mxu0 0.0
    %429 = vmatprep.subr.mxu0 0.0
    %430 = vmatpush1.msra.mxu0 0.0
    %431 = vmatprep.subr.mxu0 0.0
    %432 = vmatpush1.msra.mxu0 0.0
    %433 = vmatprep.subr.mxu0 0.0
    %434 = vmatpush1.msra.mxu0 0.0
    %435 = vmatprep.subr.mxu0 0.0
    %436 = vmatpush1.msra.mxu0 0.0
    %437 = vmatprep.subr.mxu0 0.0
    %438 = vmatpush1.msra.mxu0 0.0
    %439 = vmatprep.subr.mxu0 0.0
    %440 = vmatpush1.msra.mxu0 0.0
    %441 = vmatprep.subr.mxu0 0.0
    %442 = vmatpush1.msra.mxu0 0.0
    %443 = vmatprep.subr.mxu0 0.0
    %444 = vmatpush1.msra.mxu0 0.0
    %445 = vmatprep.subr.mxu0 0.0
    %446 = vmatpush1.msra.mxu0 0.0
    %447 = vmatprep.subr.mxu0 0.0
    %448 = vmatpush1.msra.mxu0 0.0
    %449 = vmatprep.subr.mxu0 0.0
    %450 = vmatpush1.msra.mxu0 0.0
    %451 = vmatprep.subr.mxu0 0.0
    %452 = vmatpush1.msra.mxu0 0.0
    %453 = vmatprep.subr.mxu0 0.0
    %454 = vmatpush1.msra.mxu0 0.0
    %455 = vmatprep.subr.mxu0 0.0
    %456 = vmatpush1.msra.mxu0 0.0
    %457 = vmatprep.subr.mxu0 0.0
    %458 = vmatpush1.msra.mxu0 0.0
    %459 = vmatprep.mubr.f32.mxu0 0.0
    %460 = vmatmul.mubr.f32.gmra.mrb[0].mxu0 %v393
    %v461 = vpop.f32.mrb[0].mxu0
    %v462 = vadd.f32 0.0, %v461
    %v463 = vpop.f32.mrb[0].mxu0
    %464 = vdwg.mxu0
    %v465 = vadd.f32 %v392, %v462
    %v466 = vtanh.pop %v465
    %v467 = vsel %vm60, %v466, %v465
    %468 = vst.msk [vmem:[#allocation8 + $0x8] sm:$0xff] %vm139, %v467
    %s469 = scalar_lea.vmem [#allocation3], 40
    %v470 = vld [vmem:[%s469] sm:$0xff]
    %v472 = vsel %vm62, %v467, 0
    %474 = vmatprep.subr.mxu0 0.0
    %475 = vmatpush1.msra.mxu0 %v49
    %476 = vmatprep.subr.mxu0 0.0
    %477 = vmatpush1.msra.mxu0 %v50
    %478 = vmatprep.subr.mxu0 0.0
    %479 = vmatpush1.msra.mxu0 %v51
    %480 = vmatprep.subr.mxu0 0.0
    %481 = vmatpush1.msra.mxu0 %v52
    %482 = vmatprep.subr.mxu0 0.0
    %483 = vmatpush1.msra.mxu0 %v53
    %484 = vmatprep.subr.mxu0 0.0
    %485 = vmatpush1.msra.mxu0 %v54
    %486 = vmatprep.subr.mxu0 0.0
    %487 = vmatpush1.msra.mxu0 %v55
    %488 = vmatprep.subr.mxu0 0.0
    %489 = vmatpush1.msra.mxu0 %v56
    %490 = vmatprep.subr.mxu0 0.0
    %491 = vmatpush1.msra.mxu0 0.0
    %492 = vmatprep.subr.mxu0 0.0
    %493 = vmatpush1.msra.mxu0 0.0
    %494 = vmatprep.subr.mxu0 0.0
    %495 = vmatpush1.msra.mxu0 0.0
    %496 = vmatprep.subr.mxu0 0.0
    %497 = vmatpush1.msra.mxu0 0.0
    %498 = vmatprep.subr.mxu0 0.0
    %499 = vmatpush1.msra.mxu0 0.0
    %500 = vmatprep.subr.mxu0 0.0
    %501 = vmatpush1.msra.mxu0 0.0
    %502 = vmatprep.subr.mxu0 0.0
    %503 = vmatpush1.msra.mxu0 0.0
    %504 = vmatprep.subr.mxu0 0.0
    %505 = vmatpush1.msra.mxu0 0.0
    %506 = vmatprep.subr.mxu0 0.0
    %507 = vmatpush1.msra.mxu0 0.0
    %508 = vmatprep.subr.mxu0 0.0
    %509 = vmatpush1.msra.mxu0 0.0
    %510 = vmatprep.subr.mxu0 0.0
    %511 = vmatpush1.msra.mxu0 0.0
    %512 = vmatprep.subr.mxu0 0.0
    %513 = vmatpush1.msra.mxu0 0.0
    %514 = vmatprep.subr.mxu0 0.0
    %515 = vmatpush1.msra.mxu0 0.0
    %516 = vmatprep.subr.mxu0 0.0
    %517 = vmatpush1.msra.mxu0 0.0
    %518 = vmatprep.subr.mxu0 0.0
    %519 = vmatpush1.msra.mxu0 0.0
    %520 = vmatprep.subr.mxu0 0.0
    %521 = vmatpush1.msra.mxu0 0.0
    %522 = vmatprep.subr.mxu0 0.0
    %523 = vmatpush1.msra.mxu0 0.0
    %524 = vmatprep.subr.mxu0 0.0
    %525 = vmatpush1.msra.mxu0 0.0
    %526 = vmatprep.subr.mxu0 0.0
    %527 = vmatpush1.msra.mxu0 0.0
    %528 = vmatprep.subr.mxu0 0.0
    %529 = vmatpush1.msra.mxu0 0.0
    %530 = vmatprep.subr.mxu0 0.0
    %531 = vmatpush1.msra.mxu0 0.0
    %532 = vmatprep.subr.mxu0 0.0
    %533 = vmatpush1.msra.mxu0 0.0
    %534 = vmatprep.subr.mxu0 0.0
    %535 = vmatpush1.msra.mxu0 0.0
    %536 = vmatprep.subr.mxu0 0.0
    %537 = vmatpush1.msra.mxu0 0.0
    %538 = vmatprep.mubr.f32.mxu0 0.0
    %539 = vmatmul.mubr.f32.gmra.mrb[0].mxu0 %v472
    %v540 = vpop.f32.mrb[0].mxu0
    %v541 = vadd.f32 0.0, %v540
    %v542 = vpop.f32.mrb[0].mxu0
    %543 = vdwg.mxu0
    %v544 = vadd.f32 %v470, %v541
    %v545 = vtanh.pop %v544
    %v546 = vsel %vm60, %v545, %v544
    %548 = vrot.lane.b32.xlu0 %v546, 32
    %v549 = vpop.permute.xlu0 %548
    %551 = vst.msk [vmem:[#allocation8 + $0x8] sm:$0xff] %vm223, %v549
    %s552 = scalar_lea.vmem [#allocation3], 48
    %v553 = vld [vmem:[%s552] sm:$0xff]
    %v554 = vsel %vm62, %v546, 0
    %556 = vmatprep.subr.mxu0 0.0
    %557 = vmatpush1.msra.mxu0 %v49
    %558 = vmatprep.subr.mxu0 0.0
    %559 = vmatpush1.msra.mxu0 %v50
    %560 = vmatprep.subr.mxu0 0.0
    %561 = vmatpush1.msra.mxu0 %v51
    %562 = vmatprep.subr.mxu0 0.0
    %563 = vmatpush1.msra.mxu0 %v52
    %564 = vmatprep.subr.mxu0 0.0
    %565 = vmatpush1.msra.mxu0 %v53
    %566 = vmatprep.subr.mxu0 0.0
    %567 = vmatpush1.msra.mxu0 %v54
    %568 = vmatprep.subr.mxu0 0.0
    %569 = vmatpush1.msra.mxu0 %v55
    %570 = vmatprep.subr.mxu0 0.0
    %571 = vmatpush1.msra.mxu0 %v56
    %572 = vmatprep.subr.mxu0 0.0
    %573 = vmatpush1.msra.mxu0 0.0
    %574 = vmatprep.subr.mxu0 0.0
    %575 = vmatpush1.msra.mxu0 0.0
    %576 = vmatprep.subr.mxu0 0.0
    %577 = vmatpush1.msra.mxu0 0.0
    %578 = vmatprep.subr.mxu0 0.0
    %579 = vmatpush1.msra.mxu0 0.0
    %580 = vmatprep.subr.mxu0 0.0
    %581 = vmatpush1.msra.mxu0 0.0
    %582 = vmatprep.subr.mxu0 0.0
    %583 = vmatpush1.msra.mxu0 0.0
    %584 = vmatprep.subr.mxu0 0.0
    %585 = vmatpush1.msra.mxu0 0.0
    %586 = vmatprep.subr.mxu0 0.0
    %587 = vmatpush1.msra.mxu0 0.0
    %588 = vmatprep.subr.mxu0 0.0
    %589 = vmatpush1.msra.mxu0 0.0
    %590 = vmatprep.subr.mxu0 0.0
    %591 = vmatpush1.msra.mxu0 0.0
    %592 = vmatprep.subr.mxu0 0.0
    %593 = vmatpush1.msra.mxu0 0.0
    %594 = vmatprep.subr.mxu0 0.0
    %595 = vmatpush1.msra.mxu0 0.0
    %596 = vmatprep.subr.mxu0 0.0
    %597 = vmatpush1.msra.mxu0 0.0
    %598 = vmatprep.subr.mxu0 0.0
    %599 = vmatpush1.msra.mxu0 0.0
    %600 = vmatprep.subr.mxu0 0.0
    %601 = vmatpush1.msra.mxu0 0.0
    %602 = vmatprep.subr.mxu0 0.0
    %603 = vmatpush1.msra.mxu0 0.0
    %604 = vmatprep.subr.mxu0 0.0
    %605 = vmatpush1.msra.mxu0 0.0
    %606 = vmatprep.subr.mxu0 0.0
    %607 = vmatpush1.msra.mxu0 0.0
    %608 = vmatprep.subr.mxu0 0.0
    %609 = vmatpush1.msra.mxu0 0.0
    %610 = vmatprep.subr.mxu0 0.0
    %611 = vmatpush1.msra.mxu0 0.0
    %612 = vmatprep.subr.mxu0 0.0
    %613 = vmatpush1.msra.mxu0 0.0
    %614 = vmatprep.subr.mxu0 0.0
    %615 = vmatpush1.msra.mxu0 0.0
    %616 = vmatprep.subr.mxu0 0.0
    %617 = vmatpush1.msra.mxu0 0.0
    %618 = vmatprep.subr.mxu0 0.0
    %619 = vmatpush1.msra.mxu0 0.0
    %620 = vmatprep.mubr.f32.mxu0 0.0
    %621 = vmatmul.mubr.f32.gmra.mrb[0].mxu0 %v554
    %v622 = vpop.f32.mrb[0].mxu0
    %v623 = vadd.f32 0.0, %v622
    %v624 = vpop.f32.mrb[0].mxu0
    %625 = vdwg.mxu0
    %v626 = vadd.f32 %v553, %v623
    %v627 = vtanh.pop %v626
    %v628 = vsel %vm60, %v627, %v626
    %630 = vrot.lane.b32.xlu0 %v628, 64
    %v631 = vpop.permute.xlu0 %630
    %633 = vst.msk [vmem:[#allocation8 + $0x8] sm:$0xff] %vm306, %v631
    %s634 = scalar_lea.vmem [#allocation3], 56
    %v635 = vld [vmem:[%s634] sm:$0xff]
    %v636 = vsel %vm62, %v628, 0
    %638 = vmatprep.subr.mxu0 0.0
    %639 = vmatpush1.msra.mxu0 %v49
    %640 = vmatprep.subr.mxu0 0.0
    %641 = vmatpush1.msra.mxu0 %v50
    %642 = vmatprep.subr.mxu0 0.0
    %643 = vmatpush1.msra.mxu0 %v51
    %644 = vmatprep.subr.mxu0 0.0
    %645 = vmatpush1.msra.mxu0 %v52
    %646 = vmatprep.subr.mxu0 0.0
    %647 = vmatpush1.msra.mxu0 %v53
    %648 = vmatprep.subr.mxu0 0.0
    %649 = vmatpush1.msra.mxu0 %v54
    %650 = vmatprep.subr.mxu0 0.0
    %651 = vmatpush1.msra.mxu0 %v55
    %652 = vmatprep.subr.mxu0 0.0
    %653 = vmatpush1.msra.mxu0 %v56
    %654 = vmatprep.subr.mxu0 0.0
    %655 = vmatpush1.msra.mxu0 0.0
    %656 = vmatprep.subr.mxu0 0.0
    %657 = vmatpush1.msra.mxu0 0.0
    %658 = vmatprep.subr.mxu0 0.0
    %659 = vmatpush1.msra.mxu0 0.0
    %660 = vmatprep.subr.mxu0 0.0
    %661 = vmatpush1.msra.mxu0 0.0
    %662 = vmatprep.subr.mxu0 0.0
    %663 = vmatpush1.msra.mxu0 0.0
    %664 = vmatprep.subr.mxu0 0.0
    %665 = vmatpush1.msra.mxu0 0.0
    %666 = vmatprep.subr.mxu0 0.0
    %667 = vmatpush1.msra.mxu0 0.0
    %668 = vmatprep.subr.mxu0 0.0
    %669 = vmatpush1.msra.mxu0 0.0
    %670 = vmatprep.subr.mxu0 0.0
    %671 = vmatpush1.msra.mxu0 0.0
    %672 = vmatprep.subr.mxu0 0.0
    %673 = vmatpush1.msra.mxu0 0.0
    %674 = vmatprep.subr.mxu0 0.0
    %675 = vmatpush1.msra.mxu0 0.0
    %676 = vmatprep.subr.mxu0 0.0
    %677 = vmatpush1.msra.mxu0 0.0
    %678 = vmatprep.subr.mxu0 0.0
    %679 = vmatpush1.msra.mxu0 0.0
    %680 = vmatprep.subr.mxu0 0.0
    %681 = vmatpush1.msra.mxu0 0.0
    %682 = vmatprep.subr.mxu0 0.0
    %683 = vmatpush1.msra.mxu0 0.0
    %684 = vmatprep.subr.mxu0 0.0
    %685 = vmatpush1.msra.mxu0 0.0
    %686 = vmatprep.subr.mxu0 0.0
    %687 = vmatpush1.msra.mxu0 0.0
    %688 = vmatprep.subr.mxu0 0.0
    %689 = vmatpush1.msra.mxu0 0.0
    %690 = vmatprep.subr.mxu0 0.0
    %691 = vmatpush1.msra.mxu0 0.0
    %692 = vmatprep.subr.mxu0 0.0
    %693 = vmatpush1.msra.mxu0 0.0
    %694 = vmatprep.subr.mxu0 0.0
    %695 = vmatpush1.msra.mxu0 0.0
    %696 = vmatprep.subr.mxu0 0.0
    %697 = vmatpush1.msra.mxu0 0.0
    %698 = vmatprep.subr.mxu0 0.0
    %699 = vmatpush1.msra.mxu0 0.0
    %700 = vmatprep.subr.mxu0 0.0
    %701 = vmatpush1.msra.mxu0 0.0
    %702 = vmatprep.mubr.f32.mxu0 0.0
    %703 = vmatmul.mubr.f32.gmra.mrb[0].mxu0 %v636
    %v704 = vpop.f32.mrb[0].mxu0
    %v705 = vadd.f32 0.0, %v704
    %v706 = vpop.f32.mrb[0].mxu0
    %707 = vdwg.mxu0
    %v708 = vadd.f32 %v635, %v705
    %v709 = vtanh.pop %v708
    %v710 = vsel %vm60, %v709, %v708
    %712 = vrot.lane.b32.xlu0 %v710, 96
    %v713 = vpop.permute.xlu0 %712
    %715 = vst.msk [vmem:[#allocation8 + $0x8] sm:$0xff] %vm389, %v713
    %716 = vst.msk [vmem:[#allocation2] sm:$0xff] %vm62, %v710
    // Predicated region
    $region22: #{tpu_custom_call.1} parent=1 // pred_check
      %p717 = pneg %p43
    $region23: #{tpu_custom_call.1} parent=1 // pred_check_branch
      %719 = sbr.rel (%p717) target = $region25
    $region24: #{tpu_custom_call.1} parent=1 // pred_region
      %720 = vst.msk [vmem:[#allocation9] sm:$0xff] %vm62, %v710
    $region25: #{tpu_custom_call.1} parent=1 // pred_fallthru
      _
    // Predicated region
    $region26: #{tpu_custom_call.1} parent=1 // pred_check
      _
    $region27: #{tpu_custom_call.1} parent=1 // pred_check_branch
      %722 = sbr.rel (0) target = $region29
    $region28: #{tpu_custom_call.1} parent=1 // pred_region
      %s724 = ssub.s32 256, 256
      %725 = vsyncadd [#allocation5], %s724
      %s727 = sshll.u32 [#allocation8], 4
      %s728 = int_to_ptr.vmem [resolvable:$true] %s727
      %730 = dma.vmem_to_hbm [thread:$0]  %s728, 256, %s2, [#allocation5]
    $region29: #{tpu_custom_call.1} parent=1 // pred_fallthru
      _
    // Predicated region
    $region30: #{tpu_custom_call.1} parent=1 // pred_check
      _
    $region31: #{tpu_custom_call.1} parent=1 // pred_check_branch
      %732 = sbr.rel (0) target = $region33
    $region32: #{tpu_custom_call.1} parent=1 // pred_region
      %s734 = ssub.s32 128, 128
      %735 = vsyncadd [#allocation10], %s734
      %s737 = sshll.u32 [#allocation9], 4
      %s738 = int_to_ptr.vmem [resolvable:$true] %s737
      %740 = dma.vmem_to_hbm [thread:$0]  %s738, 128, %s3, [#allocation10]
    $region33: #{tpu_custom_call.1} parent=1 // pred_fallthru
      _
    // Predicated region
    $region34: #{tpu_custom_call.1} parent=1 // pred_check
      _
    $region35: #{tpu_custom_call.1} parent=1 // pred_check_branch
      %742 = sbr.rel (0) target = $region37
    $region36: #{tpu_custom_call.1} parent=1 // pred_region
      %743 = dma.done [#allocation5], 256
    $region37: #{tpu_custom_call.1} parent=1 // pred_fallthru
      _
    // Predicated region
    $region38: #{tpu_custom_call.1} parent=1 // pred_check
      _
    $region39: #{tpu_custom_call.1} parent=1 // pred_check_branch
      %745 = sbr.rel (0) target = $region41
    $region40: #{tpu_custom_call.1} parent=1 // pred_region
      %746 = dma.done [#allocation10], 128
    $region41: #{tpu_custom_call.1} parent=1 // pred_fallthru
      _
    %747 = vsyncpa [#allocation4], 1
    %748 = vsyncpa [#allocation7], 1
    %749 = vsyncpa [#allocation5], 1
    %750 = vsyncpa [#allocation10], 1

</llo_original>
